<compile_context>
chip_gen: v7x
topology: tpu7x:2x2x1
jax: 0.10.0
libtpu: 0.0.40
codegen_flags: <defaults>
</compile_context>

<pallas_src>
import numpy as np
import jax
import jax.numpy as jnp
from jax.experimental import pallas as pl
from jax.experimental.pallas import tpu as pltpu


# ----------------------------------------------------------------------------
# Kernels
# ----------------------------------------------------------------------------
def _ifft_kernel_nat(x_ref, bw_ref, cm_ref, sm_ref, o_ref):
    """Natural orientation (lane dim = 2W >= 128).

    x_ref : (BH, 2W)   bf16  row (b*H + p) = [real row | imag row]
    bw_ref: (2W, 4W)   bf16  fused/folded width-IDFT basis
    cm_ref: (BH, BH)   bf16  kron(I_B, CMf) * 1/(4HW)
    sm_ref: (BH, BH)   bf16  kron(I_B, SMd) * 1/(4HW)
    o_ref : (BH, 2W)   f32   row (b*H + m) = out[b, m, :]
    """
    x = x_ref[...]
    tt = jnp.dot(x, bw_ref[...], preferred_element_type=jnp.float32)  # (BH, 4W)
    half = tt.shape[1] // 2
    tr = tt[:, :half].astype(jnp.bfloat16)   # split in f32, then cast
    ti = tt[:, half:].astype(jnp.bfloat16)
    o_ref[...] = (jnp.dot(cm_ref[...], tr, preferred_element_type=jnp.float32)
                  - jnp.dot(sm_ref[...], ti, preferred_element_type=jnp.float32))


def _ifft_kernel_t(x_ref, bw_ref, cm_ref, sm_ref, o_ref):
    """Transposed orientation (lane dim = BH, used when 2W < 128).

    x_ref : (2W, BH)   bf16  column (b, p) holds [real row | imag row]^T
    bw_ref: (4W, 2W)   bf16  fused width basis, transposed
    cm_ref: (BH, BH)   bf16  kron(I_B, CMf^T) * 1/(4HW)
    sm_ref: (BH, BH)   bf16  kron(I_B, SMd^T) * 1/(4HW)
    o_ref : (2W, BH)   f32   column (b, m) holds out[b, m, :]^T
    """
    xt = x_ref[...]
    tt = jnp.dot(bw_ref[...], xt, preferred_element_type=jnp.float32)  # (4W, BH)
    half = tt.shape[0] // 2
    tr = tt[:half, :].astype(jnp.bfloat16)   # split in f32, then cast
    ti = tt[half:, :].astype(jnp.bfloat16)
    o_ref[...] = (jnp.dot(tr, cm_ref[...], preferred_element_type=jnp.float32)
                  - jnp.dot(ti, sm_ref[...], preferred_element_type=jnp.float32))


# ----------------------------------------------------------------------------
# Host-side basis construction (float64; mirroring, crop and scale folded in)
# ----------------------------------------------------------------------------
def _build_bases(h, w):
    M, N2 = 2 * h, 2 * w
    # Width axis: fold q' in [0, 2W) onto q in [0, W) via the mirror symmetry.
    q = np.arange(w, dtype=np.float64)[:, None]
    ncol = np.arange(N2, dtype=np.float64)[None, :]
    a0 = 2.0 * np.pi * q * ncol / N2
    a1 = 2.0 * np.pi * (q + 1.0) * ncol / N2
    cnf = np.cos(a0) + np.cos(a1)                 # (W, 2W)
    snf = np.sin(a0) + np.sin(a1)
    snd = np.sin(a0) - np.sin(a1)
    cnd = np.cos(a0) - np.cos(a1)
    # [real row | imag row] @ BW = [t_r | t_i]
    bw = np.block([[cnf, snd], [-snf, cnd]])      # (2W, 4W)

    # Height axis: same fold; output rows already cropped to m in [0, H).
    p = np.arange(h, dtype=np.float64)[None, :]
    mrow = np.arange(h, dtype=np.float64)[:, None]
    b0 = 2.0 * np.pi * mrow * p / M
    b1 = 2.0 * np.pi * mrow * (p + 1.0) / M
    scale = 1.0 / (M * N2)                        # torch.ifft normalization
    cmf = (np.cos(b0) + np.cos(b1)) * scale       # (H, H)
    smd = (np.sin(b0) - np.sin(b1)) * scale
    return bw, cmf, smd


# ----------------------------------------------------------------------------
# Block-size selection
# ----------------------------------------------------------------------------
def _device_kind():
    try:
        return jax.devices()[0].device_kind.lower()
    except Exception:
        return ""


def _choose_batch_block(n, h, max_lanes):
    """Pick B_blk so BH = B_blk*H is a multiple of 128 (lane-dense stores) and
    at most max_lanes (MXU native dim). Fallthrough is capped so the (BH,BH)
    kron bases never blow VMEM."""
    if h >= max_lanes:
        return 1
    candidates = [b for b in range(1, max_lanes // h + 1) if (b * h) % 128 == 0]
    if candidates:
        covering = [b for b in candidates if b >= n]
        return min(covering) if covering else max(candidates)
    # H doesn't tile to a multiple of 128 within max_lanes: bound BH (~512
    # lanes), accept masked stores rather than an unbounded kron basis.
    return max(1, min(n, 512 // h))


# ----------------------------------------------------------------------------
# Forward wrapper
# ----------------------------------------------------------------------------
def ifft_forward(x, *, b_blk=None):
    """x: (N, 2, H, W) NCHW real/imag spectrum -> (N, 1, H, 2W) float32."""
    n, c, h, w = x.shape
    assert c == 2, "IFFT module expects 2 input channels (real, imag)"
    n2 = 2 * w                       # output width (and [real|imag] row length)

    kind = _device_kind()
    max_lanes = 128 if "v5" in kind else 256   # MXU native dim: 128 v5*, 256 v6e/v7x
    use_natural = n2 >= 128                    # natural layout already lane-dense

    if b_blk is None:
        b_blk = _choose_batch_block(n, h, max_lanes)
    n_pad = -(-n // b_blk) * b_blk

    # v7x has 2 TensorCores: make sure a single-step grid gets split when the
    # slab is big enough so both cores get work (keep blocks lane-dense).
    if ("v7" in kind and (n_pad // b_blk) == 1 and b_blk % 2 == 0
            and n_pad * h >= 256 and ((b_blk // 2) * h) % 128 == 0):
        b_blk //= 2
        n_pad = -(-n // b_blk) * b_blk

    bh = b_blk * h
    grid = n_pad // b_blk

    bw, cmf, smd = _build_bases(h, w)
    eye = np.eye(b_blk, dtype=np.float64)
    if use_natural:
        big_cm = np.kron(eye, cmf)            # (BH, BH), block-diagonal
        big_sm = np.kron(eye, smd)
        bw_arr = bw                           # (2W, 4W)
        bw_block = (n2, 2 * n2)
        kernel = _ifft_kernel_nat
    else:
        big_cm = np.kron(eye, cmf.T)
        big_sm = np.kron(eye, smd.T)
        bw_arr = bw.T                         # (4W, 2W)
        bw_block = (2 * n2, n2)
        kernel = _ifft_kernel_t

    # (N, 2, H, W) -> (N, H, 2W) with [real row | imag row], pad the batch.
    x2 = jnp.concatenate([x[:, 0], x[:, 1]], axis=-1).astype(jnp.bfloat16)
    if n_pad != n:
        x2 = jnp.pad(x2, ((0, n_pad - n), (0, 0), (0, 0)))
    x_nat = x2.reshape(n_pad * h, n2)

    if use_natural:
        x_in = x_nat
        in_block = out_block = (bh, n2)
        out_shape = (n_pad * h, n2)
        xmap = lambda i: (i, 0)
    else:
        x_in = x_nat.T                        # (2W, N_pad*H): lane-dense I/O
        in_block = out_block = (n2, bh)
        out_shape = (n2, n_pad * h)
        xmap = lambda i: (0, i)

    # Real cost of the fused kernel (3 matmuls per block) for XLA's scheduler.
    flops = int(grid * 4 * bh * n2 * (n2 + bh))
    bytes_accessed = int(n_pad * h * n2 * (2 + 4)            # bf16 in + f32 out
                         + (bw_arr.size + big_cm.size + big_sm.size) * 2)
    cost = pl.CostEstimate(flops=flops, transcendentals=0,
                           bytes_accessed=bytes_accessed)

    # Per-step VMEM working set (double-buffered I/O, bases, f32 intermediate).
    blk_bytes = (2 * bh * n2 * 2 + 2 * bh * n2 * 4
                 + 2 * (2 * n2 * n2 * 2) + 2 * (2 * bh * bh * 2)
                 + 2 * bh * 2 * n2 * 4)
    vmem_limit = None
    if blk_bytes > 24 << 20:                  # only raise when actually needed
        vmem_limit = min(int(blk_bytes) + (8 << 20), 120 << 20)

    out_flat = pl.pallas_call(
        kernel,
        out_shape=jax.ShapeDtypeStruct(out_shape, jnp.float32),
        grid_spec=pltpu.PrefetchScalarGridSpec(
            num_scalar_prefetch=0,
            grid=(grid,),
            in_specs=[
                pl.BlockSpec(in_block, xmap),                 # spectrum slab
                pl.BlockSpec(bw_block, lambda i: (0, 0)),     # width basis
                pl.BlockSpec((bh, bh), lambda i: (0, 0)),     # height cos (kron)
                pl.BlockSpec((bh, bh), lambda i: (0, 0)),     # height sin (kron)
            ],
            out_specs=pl.BlockSpec(out_block, xmap),
        ),
        compiler_params=pltpu.CompilerParams(
            dimension_semantics=("parallel",),
            vmem_limit_bytes=vmem_limit),
        cost_estimate=cost,
    )(x_in,
      jnp.asarray(bw_arr, jnp.bfloat16),
      jnp.asarray(big_cm, jnp.bfloat16),
      jnp.asarray(big_sm, jnp.bfloat16))

    if use_natural:
        out = out_flat.reshape(n_pad, h, n2)[:n]
    else:
        out = out_flat.T.reshape(n_pad, h, n2)[:n]
    return out[:, None, :, :]                 # (N, 1, H, 2W)


# ----------------------------------------------------------------------------
# Self-test
# ----------------------------------------------------------------------------
if __name__ == "__main__":
    def _reference(xin):
        real, imag = xin[:, 0], xin[:, 1]
        real2 = jnp.concatenate([real, jnp.flip(real, axis=1)], axis=1)
        real4 = jnp.concatenate([real2, jnp.flip(real2, axis=2)], axis=2)
        imag2 = jnp.concatenate([imag, jnp.flip(imag, axis=1)], axis=1)
        imag4 = jnp.concatenate([imag2, -jnp.flip(imag2, axis=2)], axis=2)
        full = jnp.real(jnp.fft.ifft2(real4 + 1j * imag4, axes=(1, 2)))
        return full[:, :xin.shape[2], :][:, None, :, :]

    # Small width (2W < 128): transposed lane-dense layout, padded batch.
    x1 = jax.random.normal(jax.random.PRNGKey(0), (2, 2, 16, 16), dtype=jnp.float32)
    out1 = jax.block_until_ready(ifft_forward(x1))
    assert out1.shape == (2, 1, 16, 32), out1.shape
    np.testing.assert_allclose(np.asarray(out1), np.asarray(_reference(x1)),
                               rtol=1e-2, atol=3e-3)

    # Wider spectrum (2W >= 128): natural orientation, no wrapper transposes.
    x2 = jax.random.normal(jax.random.PRNGKey(1), (2, 2, 8, 64), dtype=jnp.float32)
    out2 = jax.block_until_ready(ifft_forward(x2))
    assert out2.shape == (2, 1, 8, 128), out2.shape
    np.testing.assert_allclose(np.asarray(out2), np.asarray(_reference(x2)),
                               rtol=1e-2, atol=3e-3)

    print("KERNEL_OK")
</pallas_src>

<mosaic_0001>
module attributes {stable_mosaic.version = 11 : i64} {
  func.func @_ifft_kernel_t(%arg0: i32, %arg1: memref<32x128xbf16, #tpu.memory_space<vmem>>, %arg2: memref<64x32xbf16, #tpu.memory_space<vmem>>, %arg3: memref<128x128xbf16, #tpu.memory_space<vmem>>, %arg4: memref<128x128xbf16, #tpu.memory_space<vmem>>, %arg5: memref<32x128xf32, #tpu.memory_space<vmem>>) attributes {dimension_semantics = [#tpu.dimension_semantics<parallel>], iteration_bounds = array<i64: 1>, scalar_prefetch = 0 : i64, scratch_operands = 0 : i64, tpu.core_type = #tpu.core_type<tc>, window_params = [{transform_indices = @transform_0, window_bounds = array<i64: 32, 128>}, {pipeline_mode = #tpu.pipeline_mode<synchronous>, transform_indices = @transform_1, window_bounds = array<i64: 64, 32>}, {pipeline_mode = #tpu.pipeline_mode<synchronous>, transform_indices = @transform_2, window_bounds = array<i64: 128, 128>}, {pipeline_mode = #tpu.pipeline_mode<synchronous>, transform_indices = @transform_3, window_bounds = array<i64: 128, 128>}, {transform_indices = @transform_4, window_bounds = array<i64: 32, 128>}]} {
    %c0 = arith.constant 0 : index
    %c0_0 = arith.constant 0 : index
    %0 = vector.load %arg1[%c0, %c0_0] : memref<32x128xbf16, #tpu.memory_space<vmem>>, vector<32x128xbf16>
    %c0_1 = arith.constant 0 : index
    %c0_2 = arith.constant 0 : index
    %1 = vector.load %arg2[%c0_1, %c0_2] : memref<64x32xbf16, #tpu.memory_space<vmem>>, vector<64x32xbf16>
    %cst = arith.constant dense<0.000000e+00> : vector<64x128xf32>
    %2 = tpu.matmul %1, %0, %cst {dimension_numbers = #tpu.dot_dimension_numbers<[1], [0], [0], [1], [0, 0, 1, 1], [], []>} : vector<64x32xbf16>, vector<32x128xbf16>, vector<64x128xf32> -> vector<64x128xf32>
    %3 = vector.extract_strided_slice %2 {offsets = [0, 0], sizes = [32, 128], strides = [1, 1]} : vector<64x128xf32> to vector<32x128xf32>
    %4 = arith.truncf %3 : vector<32x128xf32> to vector<32x128xbf16>
    %5 = vector.extract_strided_slice %2 {offsets = [32, 0], sizes = [32, 128], strides = [1, 1]} : vector<64x128xf32> to vector<32x128xf32>
    %6 = arith.truncf %5 : vector<32x128xf32> to vector<32x128xbf16>
    %c0_3 = arith.constant 0 : index
    %c0_4 = arith.constant 0 : index
    %7 = vector.load %arg3[%c0_3, %c0_4] : memref<128x128xbf16, #tpu.memory_space<vmem>>, vector<128x128xbf16>
    %cst_5 = arith.constant dense<0.000000e+00> : vector<32x128xf32>
    %8 = tpu.matmul %4, %7, %cst_5 {dimension_numbers = #tpu.dot_dimension_numbers<[1], [0], [0], [1], [0, 0, 1, 1], [], []>} : vector<32x128xbf16>, vector<128x128xbf16>, vector<32x128xf32> -> vector<32x128xf32>
    %c0_6 = arith.constant 0 : index
    %c0_7 = arith.constant 0 : index
    %9 = vector.load %arg4[%c0_6, %c0_7] : memref<128x128xbf16, #tpu.memory_space<vmem>>, vector<128x128xbf16>
    %cst_8 = arith.constant dense<0.000000e+00> : vector<32x128xf32>
    %10 = tpu.matmul %6, %9, %cst_8 {dimension_numbers = #tpu.dot_dimension_numbers<[1], [0], [0], [1], [0, 0, 1, 1], [], []>} : vector<32x128xbf16>, vector<128x128xbf16>, vector<32x128xf32> -> vector<32x128xf32>
    %11 = arith.subf %8, %10 : vector<32x128xf32>
    %c0_9 = arith.constant 0 : index
    %c0_10 = arith.constant 0 : index
    %12 = vector.load %arg5[%c0_9, %c0_10] : memref<32x128xf32, #tpu.memory_space<vmem>>, vector<32x128xf32>
    tpu.vector_store %arg5[%c0_9, %c0_10], %11 {strides = array<i32>} : memref<32x128xf32, #tpu.memory_space<vmem>>, vector<32x128xf32>,
    return
  }
  func.func @transform_0(%arg0: i32) -> (i32, i32) {
    %c0_i32 = arith.constant 0 : i32
    %c0_i32_0 = arith.constant 0 : i32
    return %c0_i32, %arg0 : i32, i32
  }
  func.func @transform_1(%arg0: i32) -> (i32, i32) {
    %c0_i32 = arith.constant 0 : i32
    %c0_i32_0 = arith.constant 0 : i32
    %c0_i32_1 = arith.constant 0 : i32
    return %c0_i32, %c0_i32_0 : i32, i32
  }
  func.func @transform_2(%arg0: i32) -> (i32, i32) {
    %c0_i32 = arith.constant 0 : i32
    %c0_i32_0 = arith.constant 0 : i32
    %c0_i32_1 = arith.constant 0 : i32
    return %c0_i32, %c0_i32_0 : i32, i32
  }
  func.func @transform_3(%arg0: i32) -> (i32, i32) {
    %c0_i32 = arith.constant 0 : i32
    %c0_i32_0 = arith.constant 0 : i32
    %c0_i32_1 = arith.constant 0 : i32
    return %c0_i32, %c0_i32_0 : i32, i32
  }
  func.func @transform_4(%arg0: i32) -> (i32, i32) {
    %c0_i32 = arith.constant 0 : i32
    %c0_i32_0 = arith.constant 0 : i32
    return %c0_i32, %arg0 : i32, i32
  }
}

</mosaic_0001>

<llo_original>
// kernel: tpu_custom_call.1
$region0: #{tpu_custom_call.1}
  #allocation0 [shape = 'u32[]', space=smem, size = 0x4, offset = 0x4, fixed_abs, tag = 'smem constant byte address 0x4 - core index']
  #allocation1 [shape = 'u32[144,128]{1,0:T(1,128)}', space=vmem, size = 0x12000, scoped, tag = 'internal scratch']
  %s0 = inlined_call_operand.vmem [shape: bf16[32,128], index: 0, kind: input, shape index: {}]
  %s1 = inlined_call_operand.vmem [shape: bf16[64,32], index: 1, kind: input, shape index: {}]
  %s2 = inlined_call_operand.hbm [shape: bf16[128,128], index: 2, kind: input, shape index: {}]
  %s3 = inlined_call_operand.hbm [shape: bf16[128,128], index: 3, kind: input, shape index: {}]
  %s4 = inlined_call_operand.hbm [shape: f32[32,128], index: 4, kind: output, shape index: {}]
  %s5 = sld [smem:[#allocation0]]
  $region34: #{tpu_custom_call.1} parent=0
    _
  %s7 = ssub.s32 1, %s5
  %s8 = scalar_select 0, %s7, %s5
  $region1: #{tpu_custom_call.1} parent=0
    #allocation2 [shape = 'u8[32768]{0}', space=vmem, size = 0x8000, scoped, tag = 'input window, operand 2, single buffered']
    #allocation3 [shape = 's32[1]{0}', space=sflag, size = 0x4, scoped, tag = 'scoped memory for tpu_custom_call.1']
    #allocation4 [shape = 's32[1]{0}', space=sflag, size = 0x4, scoped, tag = 'scoped memory for tpu_custom_call.1']
    #allocation5 [shape = 'u8[32768]{0}', space=vmem, size = 0x8000, scoped, tag = 'input window, operand 3, single buffered']
    #allocation6 [shape = 's32[1]{0}', space=sflag, size = 0x4, scoped, tag = 'scoped memory for tpu_custom_call.1']
    #allocation7 [shape = 'u8[16384]{0}', space=vmem, size = 0x4000, scoped, tag = 'output window, operand 0, single buffered']
    %9 = vsyncpa [#allocation3], 0
    %10 = vsyncpa [#allocation6], 0
    %11 = vsyncpa [#allocation4], 0
    // Predicated region
    $region2: #{tpu_custom_call.1} parent=1 // pred_check
      _
    $region3: #{tpu_custom_call.1} parent=1 // pred_check_branch
      %13 = sbr.rel (0) target = $region5
    $region4: #{tpu_custom_call.1} parent=1 // pred_region
      _
    $region5: #{tpu_custom_call.1} parent=1 // pred_fallthru
      _
    // Predicated region
    $region6: #{tpu_custom_call.1} parent=1 // pred_check
      _
    $region7: #{tpu_custom_call.1} parent=1 // pred_check_branch
      %15 = sbr.rel (0) target = $region9
    $region8: #{tpu_custom_call.1} parent=1 // pred_region
      _
    $region9: #{tpu_custom_call.1} parent=1 // pred_fallthru
      _
    // Predicated region
    $region10: #{tpu_custom_call.1} parent=1 // pred_check
      _
    $region11: #{tpu_custom_call.1} parent=1 // pred_check_branch
      %17 = sbr.rel (0) target = $region13
    $region12: #{tpu_custom_call.1} parent=1 // pred_region
      %s19 = ssub.s32 1024, 1024
      %20 = vsyncadd [#allocation3], %s19
      %s21 = sshll.u32 [#allocation2], 4
      %s22 = int_to_ptr.vmem [resolvable:$true] %s21
      %27 = dma.hbm_to_vmem [thread:$0]  %s2, 1024, %s22, [#allocation3], 64, 64, 4
    $region13: #{tpu_custom_call.1} parent=1 // pred_fallthru
      _
    // Predicated region
    $region14: #{tpu_custom_call.1} parent=1 // pred_check
      _
    $region15: #{tpu_custom_call.1} parent=1 // pred_check_branch
      %29 = sbr.rel (0) target = $region17
    $region16: #{tpu_custom_call.1} parent=1 // pred_region
      %s31 = ssub.s32 1024, 1024
      %32 = vsyncadd [#allocation6], %s31
      %s33 = sshll.u32 [#allocation5], 4
      %s34 = int_to_ptr.vmem [resolvable:$true] %s33
      %39 = dma.hbm_to_vmem [thread:$0]  %s3, 1024, %s34, [#allocation6], 64, 64, 4
    $region17: #{tpu_custom_call.1} parent=1 // pred_fallthru
      _
    // Predicated region
    $region18: #{tpu_custom_call.1} parent=1 // pred_check
      _
    $region19: #{tpu_custom_call.1} parent=1 // pred_check_branch
      %41 = sbr.rel (0) target = $region21
    $region20: #{tpu_custom_call.1} parent=1 // pred_region
      %42 = dma.done [#allocation3], 1024
    $region21: #{tpu_custom_call.1} parent=1 // pred_fallthru
      _
    // Predicated region
    $region22: #{tpu_custom_call.1} parent=1 // pred_check
      _
    $region23: #{tpu_custom_call.1} parent=1 // pred_check_branch
      %44 = sbr.rel (0) target = $region25
    $region24: #{tpu_custom_call.1} parent=1 // pred_region
      %45 = dma.done [#allocation6], 1024
    $region25: #{tpu_custom_call.1} parent=1 // pred_fallthru
      _
    %v47 = vld [vmem:[%s0] sm:$0xf]
    %v48 = vld [vmem:[%s0 + $0x4] sm:$0xf]
    %v49 = vld [vmem:[%s0 + $0x8] sm:$0xf]
    %v50 = vld [vmem:[%s0 + $0xc] sm:$0xf]
    %v51 = vld [vmem:[%s1] sm:$0xf]
    %v52 = vld [vmem:[%s1 + $0x4] sm:$0xf]
    %v53 = vld [vmem:[%s1 + $0x8] sm:$0xf]
    %v54 = vld [vmem:[%s1 + $0xc] sm:$0xf]
    %v55 = vld [vmem:[%s1 + $0x10] sm:$0xf]
    %v56 = vld [vmem:[%s1 + $0x14] sm:$0xf]
    %v57 = vld [vmem:[%s1 + $0x18] sm:$0xf]
    %v58 = vld [vmem:[%s1 + $0x1c] sm:$0xf]
    %v67 = vunpack.c.l.b16 %v51
    %v68 = vunpack.c.l.b16 %v52
    %v69 = vunpack.c.l.b16 %v53
    %v70 = vunpack.c.l.b16 %v54
    %v71 = vunpack.c.l.b16 %v55
    %v72 = vunpack.c.l.b16 %v56
    %v73 = vunpack.c.l.b16 %v57
    %v74 = vunpack.c.l.b16 %v58
    %v75 = vpack.c.b16 %v68, %v67
    %v76 = vpack.c.b16 %v70, %v69
    %v77 = vpack.c.b16 %v72, %v71
    %v78 = vpack.c.b16 %v74, %v73
    %v83 = vunpack.c.l.b16 %v47
    %v84 = vunpack.c.l.b16 %v48
    %v85 = vunpack.c.l.b16 %v49
    %v86 = vunpack.c.l.b16 %v50
    %v87 = vpack.c.b16 %v84, %v83
    %v88 = vpack.c.b16 %v86, %v85
    %vm91 = vcmask 261120
    %v93 = vsel %vm91, %v75, 0
    %v96 = vsel %vm91, %v76, 0
    %v99 = vsel %vm91, %v77, 0
    %v102 = vsel %vm91, %v78, 0
    %104 = vmatprep.subr.bf16.mxu0 0
    %105 = vmatpush1.bf16.msra.mxu0 %v87
    %106 = vmatprep.subr.bf16.mxu0 0
    %107 = vmatpush1.bf16.msra.mxu0 %v88
    %108 = vmatprep.subr.bf16.mxu0 0
    %109 = vmatpush1.bf16.msra.mxu0 0
    %110 = vmatprep.subr.bf16.mxu0 0
    %111 = vmatpush1.bf16.msra.mxu0 0
    %112 = vmatprep.subr.bf16.mxu0 0
    %113 = vmatpush1.bf16.msra.mxu0 0
    %114 = vmatprep.subr.bf16.mxu0 0
    %115 = vmatpush1.bf16.msra.mxu0 0
    %116 = vmatprep.subr.bf16.mxu0 0
    %117 = vmatpush1.bf16.msra.mxu0 0
    %118 = vmatprep.subr.bf16.mxu0 0
    %119 = vmatpush1.bf16.msra.mxu0 0
    %120 = vmatprep.subr.bf16.mxu0 0
    %121 = vmatpush1.bf16.msra.mxu0 0
    %122 = vmatprep.subr.bf16.mxu0 0
    %123 = vmatpush1.bf16.msra.mxu0 0
    %124 = vmatprep.subr.bf16.mxu0 0
    %125 = vmatpush1.bf16.msra.mxu0 0
    %126 = vmatprep.subr.bf16.mxu0 0
    %127 = vmatpush1.bf16.msra.mxu0 0
    %128 = vmatprep.subr.bf16.mxu0 0
    %129 = vmatpush1.bf16.msra.mxu0 0
    %130 = vmatprep.subr.bf16.mxu0 0
    %131 = vmatpush1.bf16.msra.mxu0 0
    %132 = vmatprep.subr.bf16.mxu0 0
    %133 = vmatpush1.bf16.msra.mxu0 0
    %134 = vmatprep.subr.bf16.mxu0 0
    %135 = vmatpush1.bf16.msra.mxu0 0
    %136 = vmatprep.mubr.bf16.mxu0 0
    %137 = vmatmul.mubr.bf16.gmra.mrb[0].mxu0 %v93
    %v138 = vpop.f32.mrb[0].mxu0
    %v139 = vadd.f32 0.0, %v138
    %v140 = vpop.f32.mrb[0].mxu0
    %v141 = vpop.f32.mrb[0].mxu0
    %v142 = vadd.f32 0.0, %v141
    %v143 = vpop.f32.mrb[0].mxu0
    %144 = vmatprep.mubr.bf16.mxu0 0
    %145 = vmatmul.mubr.bf16.gmra.mrb[0].mxu0 %v96
    %v146 = vpop.f32.mrb[0].mxu0
    %v147 = vadd.f32 0.0, %v146
    %v148 = vpop.f32.mrb[0].mxu0
    %v149 = vpop.f32.mrb[0].mxu0
    %v150 = vadd.f32 0.0, %v149
    %v151 = vpop.f32.mrb[0].mxu0
    %152 = vmatprep.mubr.bf16.mxu0 0
    %153 = vmatmul.mubr.bf16.gmra.mrb[0].mxu0 %v99
    %v154 = vpop.f32.mrb[0].mxu0
    %v155 = vadd.f32 0.0, %v154
    %v156 = vpop.f32.mrb[0].mxu0
    %v157 = vpop.f32.mrb[0].mxu0
    %v158 = vadd.f32 0.0, %v157
    %v159 = vpop.f32.mrb[0].mxu0
    %160 = vmatprep.mubr.bf16.mxu0 0
    %161 = vmatmul.mubr.bf16.gmra.mrb[0].mxu0 %v102
    %v162 = vpop.f32.mrb[0].mxu0
    %v163 = vadd.f32 0.0, %v162
    %v164 = vpop.f32.mrb[0].mxu0
    %v165 = vpop.f32.mrb[0].mxu0
    %v166 = vadd.f32 0.0, %v165
    %v167 = vpop.f32.mrb[0].mxu0
    %168 = vdwg.mxu0
    %v169 = vpack.c.bf16 %v142, %v139
    %v170 = vpack.c.bf16 %v150, %v147
    %v171 = vpack.c.bf16 %v158, %v155
    %v172 = vpack.c.bf16 %v166, %v163
    %v173 = vld [vmem:[#allocation2] sm:$0xf]
    %v174 = vld [vmem:[#allocation2 + $0x4] sm:$0xf]
    %v175 = vld [vmem:[#allocation2 + $0x8] sm:$0xf]
    %v176 = vld [vmem:[#allocation2 + $0xc] sm:$0xf]
    %v177 = vld [vmem:[#allocation2 + $0x10] sm:$0xf]
    %v178 = vld [vmem:[#allocation2 + $0x14] sm:$0xf]
    %v179 = vld [vmem:[#allocation2 + $0x18] sm:$0xf]
    %v180 = vld [vmem:[#allocation2 + $0x1c] sm:$0xf]
    %v181 = vld [vmem:[#allocation2 + $0x20] sm:$0xf]
    %v182 = vld [vmem:[#allocation2 + $0x24] sm:$0xf]
    %v183 = vld [vmem:[#allocation2 + $0x28] sm:$0xf]
    %v184 = vld [vmem:[#allocation2 + $0x2c] sm:$0xf]
    %v185 = vld [vmem:[#allocation2 + $0x30] sm:$0xf]
    %v186 = vld [vmem:[#allocation2 + $0x34] sm:$0xf]
    %v187 = vld [vmem:[#allocation2 + $0x38] sm:$0xf]
    %v188 = vld [vmem:[#allocation2 + $0x3c] sm:$0xf]
    %v205 = vunpack.c.l.b16 %v173
    %v206 = vunpack.c.l.b16 %v174
    %v207 = vunpack.c.l.b16 %v175
    %v208 = vunpack.c.l.b16 %v176
    %v209 = vunpack.c.l.b16 %v177
    %v210 = vunpack.c.l.b16 %v178
    %v211 = vunpack.c.l.b16 %v179
    %v212 = vunpack.c.l.b16 %v180
    %v213 = vunpack.c.l.b16 %v181
    %v214 = vunpack.c.l.b16 %v182
    %v215 = vunpack.c.l.b16 %v183
    %v216 = vunpack.c.l.b16 %v184
    %v217 = vunpack.c.l.b16 %v185
    %v218 = vunpack.c.l.b16 %v186
    %v219 = vunpack.c.l.b16 %v187
    %v220 = vunpack.c.l.b16 %v188
    %v221 = vpack.c.b16 %v206, %v205
    %v222 = vpack.c.b16 %v208, %v207
    %v223 = vpack.c.b16 %v210, %v209
    %v224 = vpack.c.b16 %v212, %v211
    %v225 = vpack.c.b16 %v214, %v213
    %v226 = vpack.c.b16 %v216, %v215
    %v227 = vpack.c.b16 %v218, %v217
    %v228 = vpack.c.b16 %v220, %v219
    %237 = vmatprep.subr.bf16.mxu0 0
    %238 = vmatpush1.bf16.msra.mxu0 %v221
    %239 = vmatprep.subr.bf16.mxu0 0
    %240 = vmatpush1.bf16.msra.mxu0 %v222
    %241 = vmatprep.subr.bf16.mxu0 0
    %242 = vmatpush1.bf16.msra.mxu0 %v223
    %243 = vmatprep.subr.bf16.mxu0 0
    %244 = vmatpush1.bf16.msra.mxu0 %v224
    %245 = vmatprep.subr.bf16.mxu0 0
    %246 = vmatpush1.bf16.msra.mxu0 %v225
    %247 = vmatprep.subr.bf16.mxu0 0
    %248 = vmatpush1.bf16.msra.mxu0 %v226
    %249 = vmatprep.subr.bf16.mxu0 0
    %250 = vmatpush1.bf16.msra.mxu0 %v227
    %251 = vmatprep.subr.bf16.mxu0 0
    %252 = vmatpush1.bf16.msra.mxu0 %v228
    %253 = vmatprep.subr.bf16.mxu0 0
    %254 = vmatpush1.bf16.msra.mxu0 0
    %255 = vmatprep.subr.bf16.mxu0 0
    %256 = vmatpush1.bf16.msra.mxu0 0
    %257 = vmatprep.subr.bf16.mxu0 0
    %258 = vmatpush1.bf16.msra.mxu0 0
    %259 = vmatprep.subr.bf16.mxu0 0
    %260 = vmatpush1.bf16.msra.mxu0 0
    %261 = vmatprep.subr.bf16.mxu0 0
    %262 = vmatpush1.bf16.msra.mxu0 0
    %263 = vmatprep.subr.bf16.mxu0 0
    %264 = vmatpush1.bf16.msra.mxu0 0
    %265 = vmatprep.subr.bf16.mxu0 0
    %266 = vmatpush1.bf16.msra.mxu0 0
    %267 = vmatprep.subr.bf16.mxu0 0
    %268 = vmatpush1.bf16.msra.mxu0 0
    %269 = vmatprep.mubr.bf16.mxu0 0
    %270 = vmatmul.mubr.bf16.gmra.mrb[0].mxu0 %v169
    %v271 = vpop.f32.mrb[0].mxu0
    %v272 = vadd.f32 0.0, %v271
    %v273 = vpop.f32.mrb[0].mxu0
    %v274 = vpop.f32.mrb[0].mxu0
    %v275 = vadd.f32 0.0, %v274
    %v276 = vpop.f32.mrb[0].mxu0
    %277 = vmatprep.mubr.bf16.mxu0 0
    %278 = vmatmul.mubr.bf16.gmra.mrb[0].mxu0 %v170
    %v279 = vpop.f32.mrb[0].mxu0
    %v280 = vadd.f32 0.0, %v279
    %v281 = vpop.f32.mrb[0].mxu0
    %v282 = vpop.f32.mrb[0].mxu0
    %v283 = vadd.f32 0.0, %v282
    %v284 = vpop.f32.mrb[0].mxu0
    %285 = vdwg.mxu0
    %v286 = vld [vmem:[#allocation5] sm:$0xf]
    %v287 = vld [vmem:[#allocation5 + $0x4] sm:$0xf]
    %v288 = vld [vmem:[#allocation5 + $0x8] sm:$0xf]
    %v289 = vld [vmem:[#allocation5 + $0xc] sm:$0xf]
    %v290 = vld [vmem:[#allocation5 + $0x10] sm:$0xf]
    %v291 = vld [vmem:[#allocation5 + $0x14] sm:$0xf]
    %v292 = vld [vmem:[#allocation5 + $0x18] sm:$0xf]
    %v293 = vld [vmem:[#allocation5 + $0x1c] sm:$0xf]
    %v294 = vld [vmem:[#allocation5 + $0x20] sm:$0xf]
    %v295 = vld [vmem:[#allocation5 + $0x24] sm:$0xf]
    %v296 = vld [vmem:[#allocation5 + $0x28] sm:$0xf]
    %v297 = vld [vmem:[#allocation5 + $0x2c] sm:$0xf]
    %v298 = vld [vmem:[#allocation5 + $0x30] sm:$0xf]
    %v299 = vld [vmem:[#allocation5 + $0x34] sm:$0xf]
    %v300 = vld [vmem:[#allocation5 + $0x38] sm:$0xf]
    %v301 = vld [vmem:[#allocation5 + $0x3c] sm:$0xf]
    %v318 = vunpack.c.l.b16 %v286
    %v319 = vunpack.c.l.b16 %v287
    %v320 = vunpack.c.l.b16 %v288
    %v321 = vunpack.c.l.b16 %v289
    %v322 = vunpack.c.l.b16 %v290
    %v323 = vunpack.c.l.b16 %v291
    %v324 = vunpack.c.l.b16 %v292
    %v325 = vunpack.c.l.b16 %v293
    %v326 = vunpack.c.l.b16 %v294
    %v327 = vunpack.c.l.b16 %v295
    %v328 = vunpack.c.l.b16 %v296
    %v329 = vunpack.c.l.b16 %v297
    %v330 = vunpack.c.l.b16 %v298
    %v331 = vunpack.c.l.b16 %v299
    %v332 = vunpack.c.l.b16 %v300
    %v333 = vunpack.c.l.b16 %v301
    %v334 = vpack.c.b16 %v319, %v318
    %v335 = vpack.c.b16 %v321, %v320
    %v336 = vpack.c.b16 %v323, %v322
    %v337 = vpack.c.b16 %v325, %v324
    %v338 = vpack.c.b16 %v327, %v326
    %v339 = vpack.c.b16 %v329, %v328
    %v340 = vpack.c.b16 %v331, %v330
    %v341 = vpack.c.b16 %v333, %v332
    %350 = vmatprep.subr.bf16.mxu0 0
    %351 = vmatpush1.bf16.msra.mxu0 %v334
    %352 = vmatprep.subr.bf16.mxu0 0
    %353 = vmatpush1.bf16.msra.mxu0 %v335
    %354 = vmatprep.subr.bf16.mxu0 0
    %355 = vmatpush1.bf16.msra.mxu0 %v336
    %356 = vmatprep.subr.bf16.mxu0 0
    %357 = vmatpush1.bf16.msra.mxu0 %v337
    %358 = vmatprep.subr.bf16.mxu0 0
    %359 = vmatpush1.bf16.msra.mxu0 %v338
    %360 = vmatprep.subr.bf16.mxu0 0
    %361 = vmatpush1.bf16.msra.mxu0 %v339
    %362 = vmatprep.subr.bf16.mxu0 0
    %363 = vmatpush1.bf16.msra.mxu0 %v340
    %364 = vmatprep.subr.bf16.mxu0 0
    %365 = vmatpush1.bf16.msra.mxu0 %v341
    %366 = vmatprep.subr.bf16.mxu0 0
    %367 = vmatpush1.bf16.msra.mxu0 0
    %368 = vmatprep.subr.bf16.mxu0 0
    %369 = vmatpush1.bf16.msra.mxu0 0
    %370 = vmatprep.subr.bf16.mxu0 0
    %371 = vmatpush1.bf16.msra.mxu0 0
    %372 = vmatprep.subr.bf16.mxu0 0
    %373 = vmatpush1.bf16.msra.mxu0 0
    %374 = vmatprep.subr.bf16.mxu0 0
    %375 = vmatpush1.bf16.msra.mxu0 0
    %376 = vmatprep.subr.bf16.mxu0 0
    %377 = vmatpush1.bf16.msra.mxu0 0
    %378 = vmatprep.subr.bf16.mxu0 0
    %379 = vmatpush1.bf16.msra.mxu0 0
    %380 = vmatprep.subr.bf16.mxu0 0
    %381 = vmatpush1.bf16.msra.mxu0 0
    %382 = vmatprep.mubr.bf16.mxu0 0
    %383 = vmatmul.mubr.bf16.gmra.mrb[0].mxu0 %v171
    %v384 = vpop.f32.mrb[0].mxu0
    %v385 = vadd.f32 0.0, %v384
    %v386 = vpop.f32.mrb[0].mxu0
    %v387 = vpop.f32.mrb[0].mxu0
    %v388 = vadd.f32 0.0, %v387
    %v389 = vpop.f32.mrb[0].mxu0
    %390 = vmatprep.mubr.bf16.mxu0 0
    %391 = vmatmul.mubr.bf16.gmra.mrb[0].mxu0 %v172
    %v392 = vpop.f32.mrb[0].mxu0
    %v393 = vadd.f32 0.0, %v392
    %v394 = vpop.f32.mrb[0].mxu0
    %v395 = vpop.f32.mrb[0].mxu0
    %v396 = vadd.f32 0.0, %v395
    %v397 = vpop.f32.mrb[0].mxu0
    %398 = vdwg.mxu0
    %v399 = vsub.f32 %v272, %v385
    %v400 = vsub.f32 %v275, %v388
    %v401 = vsub.f32 %v280, %v393
    %v402 = vsub.f32 %v283, %v396
    %403 = vst [vmem:[#allocation7] sm:$0xff] %v399
    %404 = vst [vmem:[#allocation7 + $0x8] sm:$0xff] %v400
    %405 = vst [vmem:[#allocation7 + $0x10] sm:$0xff] %v401
    %406 = vst [vmem:[#allocation7 + $0x18] sm:$0xff] %v402
    // Predicated region
    $region26: #{tpu_custom_call.1} parent=1 // pred_check
      _
    $region27: #{tpu_custom_call.1} parent=1 // pred_check_branch
      %408 = sbr.rel (0) target = $region29
    $region28: #{tpu_custom_call.1} parent=1 // pred_region
      %s410 = ssub.s32 512, 512
      %411 = vsyncadd [#allocation4], %s410
      %s412 = sshll.u32 [#allocation7], 4
      %s413 = int_to_ptr.vmem [resolvable:$true] %s412
      %418 = dma.vmem_to_hbm [thread:$0]  %s413, 512, %s4, [#allocation4], 128, 128, 8
    $region29: #{tpu_custom_call.1} parent=1 // pred_fallthru
      _
    // Predicated region
    $region30: #{tpu_custom_call.1} parent=1 // pred_check
      _
    $region31: #{tpu_custom_call.1} parent=1 // pred_check_branch
      %420 = sbr.rel (0) target = $region33
    $region32: #{tpu_custom_call.1} parent=1 // pred_region
      %421 = dma.done [#allocation4], 512
    $region33: #{tpu_custom_call.1} parent=1 // pred_fallthru
      _
    %422 = vsyncpa [#allocation3], 1
    %423 = vsyncpa [#allocation6], 1
    %424 = vsyncpa [#allocation4], 1

</llo_original>
